<compile_context>
chip_gen: v7x
topology: tpu7x:2x2x1
jax: 0.10.0
libtpu: 0.0.40
codegen_flags: <defaults>
</compile_context>

<pallas_src>
import functools

import jax
import jax.numpy as jnp
from jax import lax
from jax.experimental import pallas as pl
from jax.experimental.pallas import tpu as pltpu

_BN_EPS = 1e-5


def _round_up(v, m):
    return (v + m - 1) // m * m


def _resident(shape):
    # Whole-array block with a constant index_map -> stays VMEM-resident.
    return pl.BlockSpec(shape, lambda i: tuple(0 for _ in shape))


def _vmem_limit(buffer_bytes):
    # Double-buffered pipeline allocation + headroom, clamped to a portable cap.
    need = 2 * buffer_bytes + (4 << 20)
    return int(min(max(need, 32 << 20), 96 << 20))


# ---------- pass 1: per-tile batch stats (+ H output on the non-prob path) ----
def _stats_h_kernel(x_ref, w1_ref, b1_ref, h_ref, part_ref):
    h = jnp.dot(x_ref[...], w1_ref[...], preferred_element_type=jnp.float32)
    h = jnp.maximum(h + b1_ref[...], 0.0)
    h_ref[...] = h.astype(h_ref.dtype)
    part_ref[...] = jnp.zeros_like(part_ref)
    part_ref[0:1, :] = jnp.sum(h, axis=0, keepdims=True)
    part_ref[1:2, :] = jnp.sum(h * h, axis=0, keepdims=True)


def _stats_kernel(x_ref, w1_ref, b1_ref, part_ref):
    h = jnp.dot(x_ref[...], w1_ref[...], preferred_element_type=jnp.float32)
    h = jnp.maximum(h + b1_ref[...], 0.0)
    part_ref[...] = jnp.zeros_like(part_ref)
    part_ref[0:1, :] = jnp.sum(h, axis=0, keepdims=True)
    part_ref[1:2, :] = jnp.sum(h * h, axis=0, keepdims=True)


# ------------------- pass 2: normalize + second matmul (+ gate) --------------
def _apply_kernel(h_ref, stats_ref, w2_ref, b2_ref, out_ref):
    h = h_ref[...].astype(jnp.float32)
    hn = h * stats_ref[0:1, :] + stats_ref[1:2, :]
    y = jnp.dot(hn.astype(w2_ref.dtype), w2_ref[...],
                preferred_element_type=jnp.float32) + b2_ref[...]
    out_ref[...] = y.astype(out_ref.dtype)


def _apply_prob_kernel(x_ref, wcat_ref, bcat_ref, stats_ref, w2_ref, b2_ref,
                       out_ref, *, m_pad):
    # Fused X @ [W1 | Wp]: one MXU pass over X instead of two.
    z = jnp.dot(x_ref[...], wcat_ref[...],
                preferred_element_type=jnp.float32) + bcat_ref[...]
    h = jnp.maximum(z[:, :m_pad], 0.0)
    hn = h * stats_ref[0:1, :] + stats_ref[1:2, :]
    y1 = jnp.dot(hn.astype(w2_ref.dtype), w2_ref[...],
                 preferred_element_type=jnp.float32) + b2_ref[...]
    out_ref[...] = (y1 * jax.nn.sigmoid(z[:, m_pad:])).astype(out_ref.dtype)


# ----------------------------------- wrapper ---------------------------------
@functools.partial(jax.jit,
                   static_argnames=("prob_flag", "block_n", "use_bf16_matmul"))
def attention_forward(x, params, prob_flag=False, block_n=512,
                      use_bf16_matmul=False):
    """x: (N, F) float32. params: dict with (in, out)-layout weights."""
    n, f = x.shape
    m = params["w1"].shape[1]

    cdt = jnp.bfloat16 if use_bf16_matmul else jnp.float32
    csz = jnp.dtype(cdt).itemsize
    out_sz = jnp.dtype(x.dtype).itemsize
    # bf16 MXU operands are native on v5e/v6e/v7x; the 2x256^2 MXUs (v6e/v7x)
    # want 256-aligned K / RHS widths, f32 path keeps 128-lane alignment.
    lane_align = 256 if use_bf16_matmul else 128
    row_align = 16 if use_bf16_matmul else 8

    f_pad = _round_up(f, lane_align)
    m_pad = _round_up(m, lane_align)
    tile_n = _round_up(min(block_n, _round_up(max(n, 1), row_align)), row_align)
    n_pad = _round_up(n, tile_n)
    num_tiles = n_pad // tile_n

    # Lane-dense padding (zeros) only when actually needed.
    if (n_pad != n) or (f_pad != f) or (x.dtype != cdt):
        xp = jnp.zeros((n_pad, f_pad), cdt).at[:n, :f].set(x.astype(cdt))
    else:
        xp = x
    w1 = jnp.zeros((f_pad, m_pad), cdt).at[:f, :m].set(params["w1"].astype(cdt))
    b1 = jnp.zeros((1, m_pad), jnp.float32).at[:, :m].set(params["b1"])
    w2 = jnp.zeros((m_pad, f_pad), cdt).at[:m, :f].set(params["w2"].astype(cdt))
    b2 = jnp.zeros((1, f_pad), jnp.float32).at[:, :f].set(params["b2"])

    x_spec = pl.BlockSpec((tile_n, f_pad), lambda i: (i, 0))
    part_spec = pl.BlockSpec((8, m_pad), lambda i: (i, 0))
    part_shape = jax.ShapeDtypeStruct((num_tiles * 8, m_pad), jnp.float32)
    p1_in_specs = [x_spec, _resident((f_pad, m_pad)), _resident((1, m_pad))]
    p1_bytes = ((tile_n * f_pad + f_pad * m_pad) * csz
                + m_pad * 4 + 8 * m_pad * 4)

    # ---- pass 1: per-tile (sum, sumsq) partials (fully "parallel") ----
    if prob_flag:
        partials = pl.pallas_call(
            _stats_kernel,
            out_shape=part_shape,
            grid=(num_tiles,),
            in_specs=p1_in_specs,
            out_specs=part_spec,
            compiler_params=pltpu.CompilerParams(
                dimension_semantics=("parallel",),
                vmem_limit_bytes=_vmem_limit(p1_bytes)),
        )(xp, w1, b1)
        h_store = None
    else:
        h_store, partials = pl.pallas_call(
            _stats_h_kernel,
            out_shape=(jax.ShapeDtypeStruct((n_pad, m_pad), cdt), part_shape),
            grid=(num_tiles,),
            in_specs=p1_in_specs,
            out_specs=(pl.BlockSpec((tile_n, m_pad), lambda i: (i, 0)),
                       part_spec),
            compiler_params=pltpu.CompilerParams(
                dimension_semantics=("parallel",),
                vmem_limit_bytes=_vmem_limit(p1_bytes + tile_n * m_pad * csz)),
        )(xp, w1, b1)

    # ---- tiny JAX epilogue: combine partials, fold BN into (scale, shift) ----
    p = partials.reshape(num_tiles, 8, m_pad)
    psum = jnp.sum(p[:, 0, :], axis=0)
    psq = jnp.sum(p[:, 1, :], axis=0)
    pad_rows = n_pad - n
    if pad_rows:
        # Zero-padded X rows each contribute exactly ReLU(b1); remove them.
        hb = jnp.maximum(b1[0], 0.0)
        psum = psum - pad_rows * hb
        psq = psq - pad_rows * (hb * hb)
    inv_n = 1.0 / n
    mean = psum * inv_n
    # TODO(synk): single-pass E[h^2]-mean^2 (clamped at 0) can lose precision
    # when mean^2 >> var; use per-tile centered partials if that matters.
    var = jnp.maximum(psq * inv_n - mean * mean, 0.0)
    gamma = jnp.zeros((m_pad,), jnp.float32).at[:m].set(params["gamma"][0])
    beta = jnp.zeros((m_pad,), jnp.float32).at[:m].set(params["beta"][0])
    scale = gamma * lax.rsqrt(var + _BN_EPS)
    shift = beta - mean * scale
    stats = jnp.stack([scale, shift], axis=0)        # (2, M_pad) fused BN

    # ---- pass 2: normalize + linear2 (+ optional sigmoid gate) ----
    out_spec = pl.BlockSpec((tile_n, f_pad), lambda i: (i, 0))
    out_shape = jax.ShapeDtypeStruct((n_pad, f_pad), x.dtype)

    if prob_flag:
        wp = jnp.zeros((f_pad, f_pad), cdt).at[:f, :f].set(
            params["wp"].astype(cdt))
        bp = jnp.zeros((1, f_pad), jnp.float32).at[:, :f].set(params["bp"])
        wcat = jnp.concatenate([w1, wp], axis=1)      # (F_pad, M_pad + F_pad)
        bcat = jnp.concatenate([b1, bp], axis=1)
        p2_bytes = (tile_n * f_pad * csz + f_pad * (m_pad + f_pad) * csz
                    + (m_pad + f_pad) * 4 + 2 * m_pad * 4
                    + m_pad * f_pad * csz + f_pad * 4
                    + tile_n * f_pad * out_sz)
        yp = pl.pallas_call(
            functools.partial(_apply_prob_kernel, m_pad=m_pad),
            out_shape=out_shape,
            grid=(num_tiles,),
            in_specs=[x_spec,
                      _resident(wcat.shape),
                      _resident(bcat.shape),
                      _resident((2, m_pad)),
                      _resident((m_pad, f_pad)),
                      _resident((1, f_pad))],
            out_specs=out_spec,
            compiler_params=pltpu.CompilerParams(
                dimension_semantics=("parallel",),
                vmem_limit_bytes=_vmem_limit(p2_bytes)),
        )(xp, wcat, bcat, stats, w2, b2)
    else:
        p2_bytes = (tile_n * m_pad * csz + 2 * m_pad * 4
                    + m_pad * f_pad * csz + f_pad * 4
                    + tile_n * f_pad * out_sz)
        yp = pl.pallas_call(
            _apply_kernel,
            out_shape=out_shape,
            grid=(num_tiles,),
            in_specs=[pl.BlockSpec((tile_n, m_pad), lambda i: (i, 0)),
                      _resident((2, m_pad)),
                      _resident((m_pad, f_pad)),
                      _resident((1, f_pad))],
            out_specs=out_spec,
            compiler_params=pltpu.CompilerParams(
                dimension_semantics=("parallel",),
                vmem_limit_bytes=_vmem_limit(p2_bytes)),
        )(h_store, stats, w2, b2)

    if n_pad == n and f_pad == f:
        return yp
    return yp[:n, :f]


# ------------------------------ init / reference -----------------------------
def init_params(key, in_feats, squeeze_factor=4, prob_flag=False):
    """Deterministic synthetic init mimicking nn.Linear's uniform init.
    Weights stored transposed (in, out); biases / BN params as (1, dim)."""
    md_feats = in_feats // squeeze_factor
    ks = jax.random.split(key, 6)

    def lin(kw, kb, fan_in, fan_out):
        bound = 1.0 / jnp.sqrt(fan_in)
        w = jax.random.uniform(kw, (fan_in, fan_out), jnp.float32, -bound, bound)
        b = jax.random.uniform(kb, (1, fan_out), jnp.float32, -bound, bound)
        return w, b

    w1, b1 = lin(ks[0], ks[1], in_feats, md_feats)
    w2, b2 = lin(ks[2], ks[3], md_feats, in_feats)
    params = {
        "w1": w1, "b1": b1,
        "gamma": jnp.ones((1, md_feats), jnp.float32),
        "beta": jnp.zeros((1, md_feats), jnp.float32),
        "w2": w2, "b2": b2,
    }
    if prob_flag:
        wp, bp = lin(ks[4], ks[5], in_feats, in_feats)
        params["wp"] = wp
        params["bp"] = bp
    return params


def attention_reference(x, params, prob_flag=False):
    """Pure-JAX reference mirroring the PyTorch forward (training-mode BN)."""
    h = jnp.maximum(x @ params["w1"] + params["b1"], 0.0)
    mean = jnp.mean(h, axis=0, keepdims=True)
    var = jnp.mean((h - mean) ** 2, axis=0, keepdims=True)
    hn = (h - mean) / jnp.sqrt(var + _BN_EPS) * params["gamma"] + params["beta"]
    y1 = hn @ params["w2"] + params["b2"]
    if prob_flag:
        y2 = x @ params["wp"] + params["bp"]
        y1 = y1 * jax.nn.sigmoid(y2)
    return y1


if __name__ == "__main__":
    key = jax.random.PRNGKey(0)
    k_x, k_p1, k_p2 = jax.random.split(key, 3)

    IN_FEATS = 32
    x = jax.random.normal(k_x, (90, IN_FEATS), jnp.float32)

    ok = True
    for prob_flag, k_p in ((False, k_p1), (True, k_p2)):
        params = init_params(k_p, IN_FEATS, squeeze_factor=4,
                             prob_flag=prob_flag)
        ref = attention_reference(x, params, prob_flag)

        # single-tile grid (tile_n=96 covers N=90; exercises padded-row fixup)
        out = jax.block_until_ready(
            attention_forward(x, params, prob_flag=prob_flag))
        ok &= bool(jnp.allclose(out, ref, atol=2e-3, rtol=2e-3))

        # multi-tile grid (3 batch tiles of 32)
        out = jax.block_until_ready(
            attention_forward(x, params, prob_flag=prob_flag, block_n=32))
        ok &= bool(jnp.allclose(out, ref, atol=2e-3, rtol=2e-3))

    # bf16 MXU-operand fast path (BN / ReLU / sigmoid math stays f32)
    params = init_params(k_p2, IN_FEATS, squeeze_factor=4, prob_flag=True)
    ref = attention_reference(x, params, prob_flag=True)
    out = jax.block_until_ready(
        attention_forward(x, params, prob_flag=True, block_n=32,
                          use_bf16_matmul=True))
    ok &= bool(jnp.allclose(out, ref, atol=1e-1, rtol=1e-1))

    if ok:
        print("KERNEL_OK")
</pallas_src>

<mosaic_0001>
module attributes {stable_mosaic.version = 11 : i64} {
  func.func @_stats_h_kernel(%arg0: i32, %arg1: memref<96x128xf32, #tpu.memory_space<vmem>>, %arg2: memref<128x128xf32, #tpu.memory_space<vmem>>, %arg3: memref<1x128xf32, #tpu.memory_space<vmem>>, %arg4: memref<96x128xf32, #tpu.memory_space<vmem>>, %arg5: memref<8x128xf32, #tpu.memory_space<vmem>>) attributes {dimension_semantics = [#tpu.dimension_semantics<parallel>], iteration_bounds = array<i64: 1>, scalar_prefetch = 0 : i64, scratch_operands = 0 : i64, tpu.core_type = #tpu.core_type<tc>, window_params = [{transform_indices = @transform_0, window_bounds = array<i64: 96, 128>}, {pipeline_mode = #tpu.pipeline_mode<synchronous>, transform_indices = @transform_1, window_bounds = array<i64: 128, 128>}, {pipeline_mode = #tpu.pipeline_mode<synchronous>, transform_indices = @transform_2, window_bounds = array<i64: 1, 128>}, {transform_indices = @transform_3, window_bounds = array<i64: 96, 128>}, {transform_indices = @transform_4, window_bounds = array<i64: 8, 128>}]} {
    %c0 = arith.constant 0 : index
    %c0_0 = arith.constant 0 : index
    %0 = vector.load %arg1[%c0, %c0_0] : memref<96x128xf32, #tpu.memory_space<vmem>>, vector<96x128xf32>
    %c0_1 = arith.constant 0 : index
    %c0_2 = arith.constant 0 : index
    %1 = vector.load %arg2[%c0_1, %c0_2] : memref<128x128xf32, #tpu.memory_space<vmem>>, vector<128x128xf32>
    %cst = arith.constant dense<0.000000e+00> : vector<96x128xf32>
    %2 = tpu.matmul %0, %1, %cst {dimension_numbers = #tpu.dot_dimension_numbers<[1], [0], [0], [1], [0, 0, 1, 1], [], []>} : vector<96x128xf32>, vector<128x128xf32>, vector<96x128xf32> -> vector<96x128xf32>
    %c0_3 = arith.constant 0 : index
    %c0_4 = arith.constant 0 : index
    %3 = vector.load %arg3[%c0_3, %c0_4] : memref<1x128xf32, #tpu.memory_space<vmem>>, vector<1x128xf32>
    %4 = vector.broadcast %3 : vector<1x128xf32> to vector<96x128xf32>
    %5 = arith.addf %2, %4 : vector<96x128xf32>
    %cst_5 = arith.constant 0.000000e+00 : f32
    %6 = vector.broadcast %cst_5 : f32 to vector<96x128xf32>
    %7 = arith.maximumf %5, %6 : vector<96x128xf32>
    %c0_6 = arith.constant 0 : index
    %c0_7 = arith.constant 0 : index
    %8 = vector.load %arg4[%c0_6, %c0_7] : memref<96x128xf32, #tpu.memory_space<vmem>>, vector<96x128xf32>
    tpu.vector_store %arg4[%c0_6, %c0_7], %7 {strides = array<i32>} : memref<96x128xf32, #tpu.memory_space<vmem>>, vector<96x128xf32>,
    %cst_8 = arith.constant 0.000000e+00 : f32
    %9 = vector.broadcast %cst_8 : f32 to vector<8x128xf32>
    %c0_9 = arith.constant 0 : index
    %c0_10 = arith.constant 0 : index
    %10 = vector.load %arg5[%c0_9, %c0_10] : memref<8x128xf32, #tpu.memory_space<vmem>>, vector<8x128xf32>
    tpu.vector_store %arg5[%c0_9, %c0_10], %9 {strides = array<i32>} : memref<8x128xf32, #tpu.memory_space<vmem>>, vector<8x128xf32>,
    %cst_11 = arith.constant dense<0.000000e+00> : vector<128xf32>
    %11 = vector.multi_reduction <add>, %7, %cst_11 [0] : vector<96x128xf32> to vector<128xf32>
    %12 = vector.shape_cast %11 : vector<128xf32> to vector<1x128xf32>
    %c0_12 = arith.constant 0 : index
    %c0_13 = arith.constant 0 : index
    %13 = vector.load %arg5[%c0_12, %c0_13] : memref<8x128xf32, #tpu.memory_space<vmem>>, vector<1x128xf32>
    tpu.vector_store %arg5[%c0_12, %c0_13], %12 {strides = array<i32>} : memref<8x128xf32, #tpu.memory_space<vmem>>, vector<1x128xf32>,
    %14 = arith.mulf %7, %7 : vector<96x128xf32>
    %cst_14 = arith.constant dense<0.000000e+00> : vector<128xf32>
    %15 = vector.multi_reduction <add>, %14, %cst_14 [0] : vector<96x128xf32> to vector<128xf32>
    %16 = vector.shape_cast %15 : vector<128xf32> to vector<1x128xf32>
    %c1 = arith.constant 1 : index
    %c0_15 = arith.constant 0 : index
    %17 = vector.load %arg5[%c1, %c0_15] : memref<8x128xf32, #tpu.memory_space<vmem>>, vector<1x128xf32>
    tpu.vector_store %arg5[%c1, %c0_15], %16 {strides = array<i32>} : memref<8x128xf32, #tpu.memory_space<vmem>>, vector<1x128xf32>,
    return
  }
  func.func @transform_0(%arg0: i32) -> (i32, i32) {
    %c0_i32 = arith.constant 0 : i32
    %c0_i32_0 = arith.constant 0 : i32
    return %arg0, %c0_i32 : i32, i32
  }
  func.func @transform_1(%arg0: i32) -> (i32, i32) {
    %c0_i32 = arith.constant 0 : i32
    %c0_i32_0 = arith.constant 0 : i32
    %c0_i32_1 = arith.constant 0 : i32
    return %c0_i32, %c0_i32_0 : i32, i32
  }
  func.func @transform_2(%arg0: i32) -> (i32, i32) {
    %c0_i32 = arith.constant 0 : i32
    %c0_i32_0 = arith.constant 0 : i32
    %c0_i32_1 = arith.constant 0 : i32
    return %c0_i32, %c0_i32_0 : i32, i32
  }
  func.func @transform_3(%arg0: i32) -> (i32, i32) {
    %c0_i32 = arith.constant 0 : i32
    %c0_i32_0 = arith.constant 0 : i32
    return %arg0, %c0_i32 : i32, i32
  }
  func.func @transform_4(%arg0: i32) -> (i32, i32) {
    %c0_i32 = arith.constant 0 : i32
    %c0_i32_0 = arith.constant 0 : i32
    return %arg0, %c0_i32 : i32, i32
  }
}

module attributes {stable_mosaic.version = 11 : i64} {
  func.func @_apply_kernel(%arg0: i32, %arg1: memref<96x128xf32, #tpu.memory_space<vmem>>, %arg2: memref<2x128xf32, #tpu.memory_space<vmem>>, %arg3: memref<128x128xf32, #tpu.memory_space<vmem>>, %arg4: memref<1x128xf32, #tpu.memory_space<vmem>>, %arg5: memref<96x128xf32, #tpu.memory_space<vmem>>) attributes {dimension_semantics = [#tpu.dimension_semantics<parallel>], iteration_bounds = array<i64: 1>, scalar_prefetch = 0 : i64, scratch_operands = 0 : i64, tpu.core_type = #tpu.core_type<tc>, window_params = [{transform_indices = @transform_0, window_bounds = array<i64: 96, 128>}, {pipeline_mode = #tpu.pipeline_mode<synchronous>, transform_indices = @transform_1, window_bounds = array<i64: 2, 128>}, {pipeline_mode = #tpu.pipeline_mode<synchronous>, transform_indices = @transform_2, window_bounds = array<i64: 128, 128>}, {pipeline_mode = #tpu.pipeline_mode<synchronous>, transform_indices = @transform_3, window_bounds = array<i64: 1, 128>}, {transform_indices = @transform_4, window_bounds = array<i64: 96, 128>}]} {
    %c0 = arith.constant 0 : index
    %c0_0 = arith.constant 0 : index
    %0 = vector.load %arg1[%c0, %c0_0] : memref<96x128xf32, #tpu.memory_space<vmem>>, vector<96x128xf32>
    %c0_1 = arith.constant 0 : index
    %c0_2 = arith.constant 0 : index
    %1 = vector.load %arg2[%c0_1, %c0_2] : memref<2x128xf32, #tpu.memory_space<vmem>>, vector<1x128xf32>
    %2 = vector.broadcast %1 : vector<1x128xf32> to vector<96x128xf32>
    %3 = arith.mulf %0, %2 : vector<96x128xf32>
    %c1 = arith.constant 1 : index
    %c0_3 = arith.constant 0 : index
    %4 = vector.load %arg2[%c1, %c0_3] : memref<2x128xf32, #tpu.memory_space<vmem>>, vector<1x128xf32>
    %5 = vector.broadcast %4 : vector<1x128xf32> to vector<96x128xf32>
    %6 = arith.addf %3, %5 : vector<96x128xf32>
    %c0_4 = arith.constant 0 : index
    %c0_5 = arith.constant 0 : index
    %7 = vector.load %arg3[%c0_4, %c0_5] : memref<128x128xf32, #tpu.memory_space<vmem>>, vector<128x128xf32>
    %cst = arith.constant dense<0.000000e+00> : vector<96x128xf32>
    %8 = tpu.matmul %6, %7, %cst {dimension_numbers = #tpu.dot_dimension_numbers<[1], [0], [0], [1], [0, 0, 1, 1], [], []>} : vector<96x128xf32>, vector<128x128xf32>, vector<96x128xf32> -> vector<96x128xf32>
    %c0_6 = arith.constant 0 : index
    %c0_7 = arith.constant 0 : index
    %9 = vector.load %arg4[%c0_6, %c0_7] : memref<1x128xf32, #tpu.memory_space<vmem>>, vector<1x128xf32>
    %10 = vector.broadcast %9 : vector<1x128xf32> to vector<96x128xf32>
    %11 = arith.addf %8, %10 : vector<96x128xf32>
    %c0_8 = arith.constant 0 : index
    %c0_9 = arith.constant 0 : index
    %12 = vector.load %arg5[%c0_8, %c0_9] : memref<96x128xf32, #tpu.memory_space<vmem>>, vector<96x128xf32>
    tpu.vector_store %arg5[%c0_8, %c0_9], %11 {strides = array<i32>} : memref<96x128xf32, #tpu.memory_space<vmem>>, vector<96x128xf32>,
    return
  }
  func.func @transform_0(%arg0: i32) -> (i32, i32) {
    %c0_i32 = arith.constant 0 : i32
    %c0_i32_0 = arith.constant 0 : i32
    return %arg0, %c0_i32 : i32, i32
  }
  func.func @transform_1(%arg0: i32) -> (i32, i32) {
    %c0_i32 = arith.constant 0 : i32
    %c0_i32_0 = arith.constant 0 : i32
    %c0_i32_1 = arith.constant 0 : i32
    return %c0_i32, %c0_i32_0 : i32, i32
  }
  func.func @transform_2(%arg0: i32) -> (i32, i32) {
    %c0_i32 = arith.constant 0 : i32
    %c0_i32_0 = arith.constant 0 : i32
    %c0_i32_1 = arith.constant 0 : i32
    return %c0_i32, %c0_i32_0 : i32, i32
  }
  func.func @transform_3(%arg0: i32) -> (i32, i32) {
    %c0_i32 = arith.constant 0 : i32
    %c0_i32_0 = arith.constant 0 : i32
    %c0_i32_1 = arith.constant 0 : i32
    return %c0_i32, %c0_i32_0 : i32, i32
  }
  func.func @transform_4(%arg0: i32) -> (i32, i32) {
    %c0_i32 = arith.constant 0 : i32
    %c0_i32_0 = arith.constant 0 : i32
    return %arg0, %c0_i32 : i32, i32
  }
}

</mosaic_0001>

<llo_original>
// kernel: attention_forward.2
$region0: #{attention_forward.2}
  #allocation0 [shape = 'u32[]', space=smem, size = 0x4, offset = 0x4, fixed_abs, tag = 'smem constant byte address 0x4 - core index']
  #allocation1 [shape = 'u32[144,128]{1,0:T(1,128)}', space=vmem, size = 0x12000, scoped, tag = 'internal scratch']
  %s0 = inlined_call_operand.vmem [shape: f32[96,128], index: 0, kind: input, shape index: {}]
  %s1 = inlined_call_operand.vmem [shape: f32[128,128], index: 1, kind: input, shape index: {}]
  %s2 = inlined_call_operand.vmem [shape: f32[1,128], index: 2, kind: input, shape index: {}]
  %s3 = inlined_call_operand.vmem [shape: f32[96,128], index: 3, kind: output, shape index: {0}]
  %s4 = inlined_call_operand.vmem [shape: f32[8,128], index: 4, kind: output, shape index: {1}]
  %5 = xla_tuple %s3, %s4
  %s6 = sld [smem:[#allocation0]]
  $region30: #{attention_forward.2} parent=0
    _
  %s8 = ssub.s32 1, %s6
  %s9 = scalar_select 0, %s8, %s6
  // Predicated region
  $region2: #{attention_forward.2} parent=0 // pred_check
    _
  $region3: #{attention_forward.2} parent=0 // pred_check_branch
    %11 = sbr.rel (0) target = $region5
  $region4: #{attention_forward.2} parent=0 // pred_region
    _
  $region5: #{attention_forward.2} parent=0 // pred_fallthru
    _
  // Predicated region
  $region6: #{attention_forward.2} parent=0 // pred_check
    _
  $region7: #{attention_forward.2} parent=0 // pred_check_branch
    %13 = sbr.rel (0) target = $region9
  $region8: #{attention_forward.2} parent=0 // pred_region
    _
  $region9: #{attention_forward.2} parent=0 // pred_fallthru
    _
  // Predicated region
  $region10: #{attention_forward.2} parent=0 // pred_check
    _
  $region11: #{attention_forward.2} parent=0 // pred_check_branch
    %15 = sbr.rel (0) target = $region13
  $region12: #{attention_forward.2} parent=0 // pred_region
    _
  $region13: #{attention_forward.2} parent=0 // pred_fallthru
    _
  %v16 = vld [vmem:[%s0] sm:$0xff]
  %v17 = vld [vmem:[%s0 + $0x8] sm:$0xff]
  %v18 = vld [vmem:[%s0 + $0x10] sm:$0xff]
  %v19 = vld [vmem:[%s0 + $0x18] sm:$0xff]
  %v20 = vld [vmem:[%s0 + $0x20] sm:$0xff]
  %v21 = vld [vmem:[%s0 + $0x28] sm:$0xff]
  %v22 = vld [vmem:[%s0 + $0x30] sm:$0xff]
  %v23 = vld [vmem:[%s0 + $0x38] sm:$0xff]
  %v24 = vld [vmem:[%s0 + $0x40] sm:$0xff]
  %v25 = vld [vmem:[%s0 + $0x48] sm:$0xff]
  %v26 = vld [vmem:[%s0 + $0x50] sm:$0xff]
  %v27 = vld [vmem:[%s0 + $0x58] sm:$0xff]
  %v28 = vld [vmem:[%s1] sm:$0xff]
  %v29 = vld [vmem:[%s1 + $0x8] sm:$0xff]
  %v30 = vld [vmem:[%s1 + $0x10] sm:$0xff]
  %v31 = vld [vmem:[%s1 + $0x18] sm:$0xff]
  %v32 = vld [vmem:[%s1 + $0x20] sm:$0xff]
  %v33 = vld [vmem:[%s1 + $0x28] sm:$0xff]
  %v34 = vld [vmem:[%s1 + $0x30] sm:$0xff]
  %v35 = vld [vmem:[%s1 + $0x38] sm:$0xff]
  %v36 = vld [vmem:[%s1 + $0x40] sm:$0xff]
  %v37 = vld [vmem:[%s1 + $0x48] sm:$0xff]
  %v38 = vld [vmem:[%s1 + $0x50] sm:$0xff]
  %v39 = vld [vmem:[%s1 + $0x58] sm:$0xff]
  %v40 = vld [vmem:[%s1 + $0x60] sm:$0xff]
  %v41 = vld [vmem:[%s1 + $0x68] sm:$0xff]
  %v42 = vld [vmem:[%s1 + $0x70] sm:$0xff]
  %v43 = vld [vmem:[%s1 + $0x78] sm:$0xff]
  %v44 = vld [vmem:[%s2] sm:$0x1]
  %v46 = vlaneseq
  %v47 = vshrl.u32 %v46, 7
  %v48 = vsub.s32 0, %v47
  %v49 = vrot.slane %v44, %v48
  %51 = vmatprep.subr.mxu0 0.0
  %52 = vmatpush1.msra.mxu0 %v28
  %53 = vmatprep.subr.mxu0 0.0
  %54 = vmatpush1.msra.mxu0 %v29
  %55 = vmatprep.subr.mxu0 0.0
  %56 = vmatpush1.msra.mxu0 %v30
  %57 = vmatprep.subr.mxu0 0.0
  %58 = vmatpush1.msra.mxu0 %v31
  %59 = vmatprep.subr.mxu0 0.0
  %60 = vmatpush1.msra.mxu0 %v32
  %61 = vmatprep.subr.mxu0 0.0
  %62 = vmatpush1.msra.mxu0 %v33
  %63 = vmatprep.subr.mxu0 0.0
  %64 = vmatpush1.msra.mxu0 %v34
  %65 = vmatprep.subr.mxu0 0.0
  %66 = vmatpush1.msra.mxu0 %v35
  %67 = vmatprep.subr.mxu0 0.0
  %68 = vmatpush1.msra.mxu0 %v36
  %69 = vmatprep.subr.mxu0 0.0
  %70 = vmatpush1.msra.mxu0 %v37
  %71 = vmatprep.subr.mxu0 0.0
  %72 = vmatpush1.msra.mxu0 %v38
  %73 = vmatprep.subr.mxu0 0.0
  %74 = vmatpush1.msra.mxu0 %v39
  %75 = vmatprep.subr.mxu0 0.0
  %76 = vmatpush1.msra.mxu0 %v40
  %77 = vmatprep.subr.mxu0 0.0
  %78 = vmatpush1.msra.mxu0 %v41
  %79 = vmatprep.subr.mxu0 0.0
  %80 = vmatpush1.msra.mxu0 %v42
  %81 = vmatprep.subr.mxu0 0.0
  %82 = vmatpush1.msra.mxu0 %v43
  %83 = vmatprep.subr.mxu0 0.0
  %84 = vmatpush1.msra.mxu0 0.0
  %85 = vmatprep.subr.mxu0 0.0
  %86 = vmatpush1.msra.mxu0 0.0
  %87 = vmatprep.subr.mxu0 0.0
  %88 = vmatpush1.msra.mxu0 0.0
  %89 = vmatprep.subr.mxu0 0.0
  %90 = vmatpush1.msra.mxu0 0.0
  %91 = vmatprep.subr.mxu0 0.0
  %92 = vmatpush1.msra.mxu0 0.0
  %93 = vmatprep.subr.mxu0 0.0
  %94 = vmatpush1.msra.mxu0 0.0
  %95 = vmatprep.subr.mxu0 0.0
  %96 = vmatpush1.msra.mxu0 0.0
  %97 = vmatprep.subr.mxu0 0.0
  %98 = vmatpush1.msra.mxu0 0.0
  %99 = vmatprep.subr.mxu0 0.0
  %100 = vmatpush1.msra.mxu0 0.0
  %101 = vmatprep.subr.mxu0 0.0
  %102 = vmatpush1.msra.mxu0 0.0
  %103 = vmatprep.subr.mxu0 0.0
  %104 = vmatpush1.msra.mxu0 0.0
  %105 = vmatprep.subr.mxu0 0.0
  %106 = vmatpush1.msra.mxu0 0.0
  %107 = vmatprep.subr.mxu0 0.0
  %108 = vmatpush1.msra.mxu0 0.0
  %109 = vmatprep.subr.mxu0 0.0
  %110 = vmatpush1.msra.mxu0 0.0
  %111 = vmatprep.subr.mxu0 0.0
  %112 = vmatpush1.msra.mxu0 0.0
  %113 = vmatprep.subr.mxu0 0.0
  %114 = vmatpush1.msra.mxu0 0.0
  %115 = vmatprep.mubr.f32.mxu0 0.0
  %116 = vmatmul.mubr.f32.gmra.mrb[0].mxu0 %v16
  %v117 = vpop.f32.mrb[0].mxu0
  %v118 = vadd.f32 %v49, %v117
  %v119 = vpop.f32.mrb[0].mxu0
  %120 = vmatprep.mubr.f32.mxu0 0.0
  %121 = vmatmul.mubr.f32.gmra.mrb[0].mxu0 %v17
  %v122 = vpop.f32.mrb[0].mxu0
  %v123 = vadd.f32 %v49, %v122
  %v124 = vpop.f32.mrb[0].mxu0
  %125 = vmatprep.mubr.f32.mxu0 0.0
  %126 = vmatmul.mubr.f32.gmra.mrb[0].mxu0 %v18
  %v127 = vpop.f32.mrb[0].mxu0
  %v128 = vadd.f32 %v49, %v127
  %v129 = vpop.f32.mrb[0].mxu0
  %130 = vmatprep.mubr.f32.mxu0 0.0
  %131 = vmatmul.mubr.f32.gmra.mrb[0].mxu0 %v19
  %v132 = vpop.f32.mrb[0].mxu0
  %v133 = vadd.f32 %v49, %v132
  %v134 = vpop.f32.mrb[0].mxu0
  %135 = vmatprep.mubr.f32.mxu0 0.0
  %136 = vmatmul.mubr.f32.gmra.mrb[0].mxu0 %v20
  %v137 = vpop.f32.mrb[0].mxu0
  %v138 = vadd.f32 %v49, %v137
  %v139 = vpop.f32.mrb[0].mxu0
  %140 = vmatprep.mubr.f32.mxu0 0.0
  %141 = vmatmul.mubr.f32.gmra.mrb[0].mxu0 %v21
  %v142 = vpop.f32.mrb[0].mxu0
  %v143 = vadd.f32 %v49, %v142
  %v144 = vpop.f32.mrb[0].mxu0
  %145 = vmatprep.mubr.f32.mxu0 0.0
  %146 = vmatmul.mubr.f32.gmra.mrb[0].mxu0 %v22
  %v147 = vpop.f32.mrb[0].mxu0
  %v148 = vadd.f32 %v49, %v147
  %v149 = vpop.f32.mrb[0].mxu0
  %150 = vmatprep.mubr.f32.mxu0 0.0
  %151 = vmatmul.mubr.f32.gmra.mrb[0].mxu0 %v23
  %v152 = vpop.f32.mrb[0].mxu0
  %v153 = vadd.f32 %v49, %v152
  %v154 = vpop.f32.mrb[0].mxu0
  %155 = vmatprep.mubr.f32.mxu0 0.0
  %156 = vmatmul.mubr.f32.gmra.mrb[0].mxu0 %v24
  %v157 = vpop.f32.mrb[0].mxu0
  %v158 = vadd.f32 %v49, %v157
  %v159 = vpop.f32.mrb[0].mxu0
  %160 = vmatprep.mubr.f32.mxu0 0.0
  %161 = vmatmul.mubr.f32.gmra.mrb[0].mxu0 %v25
  %v162 = vpop.f32.mrb[0].mxu0
  %v163 = vadd.f32 %v49, %v162
  %v164 = vpop.f32.mrb[0].mxu0
  %165 = vmatprep.mubr.f32.mxu0 0.0
  %166 = vmatmul.mubr.f32.gmra.mrb[0].mxu0 %v26
  %v167 = vpop.f32.mrb[0].mxu0
  %v168 = vadd.f32 %v49, %v167
  %v169 = vpop.f32.mrb[0].mxu0
  %170 = vmatprep.mubr.f32.mxu0 0.0
  %171 = vmatmul.mubr.f32.gmra.mrb[0].mxu0 %v27
  %v172 = vpop.f32.mrb[0].mxu0
  %v173 = vadd.f32 %v49, %v172
  %v174 = vpop.f32.mrb[0].mxu0
  %175 = vdwg.mxu0
  %v176 = vmax.f32 %v118, 0.0
  %v177 = vmax.f32 %v123, 0.0
  %v178 = vmax.f32 %v128, 0.0
  %v179 = vmax.f32 %v133, 0.0
  %v180 = vmax.f32 %v138, 0.0
  %v181 = vmax.f32 %v143, 0.0
  %v182 = vmax.f32 %v148, 0.0
  %v183 = vmax.f32 %v153, 0.0
  %v184 = vmax.f32 %v158, 0.0
  %v185 = vmax.f32 %v163, 0.0
  %v186 = vmax.f32 %v168, 0.0
  %v187 = vmax.f32 %v173, 0.0
  %188 = vst [vmem:[%s3] sm:$0xff] %v176
  %189 = vst [vmem:[%s3 + $0x8] sm:$0xff] %v177
  %190 = vst [vmem:[%s3 + $0x10] sm:$0xff] %v178
  %191 = vst [vmem:[%s3 + $0x18] sm:$0xff] %v179
  %192 = vst [vmem:[%s3 + $0x20] sm:$0xff] %v180
  %193 = vst [vmem:[%s3 + $0x28] sm:$0xff] %v181
  %194 = vst [vmem:[%s3 + $0x30] sm:$0xff] %v182
  %195 = vst [vmem:[%s3 + $0x38] sm:$0xff] %v183
  %196 = vst [vmem:[%s3 + $0x40] sm:$0xff] %v184
  %197 = vst [vmem:[%s3 + $0x48] sm:$0xff] %v185
  %198 = vst [vmem:[%s3 + $0x50] sm:$0xff] %v186
  %199 = vst [vmem:[%s3 + $0x58] sm:$0xff] %v187
  %200 = vst [vmem:[%s4] sm:$0xff] 0.0
  %v201 = vadd.f32 %v176, %v177
  %v202 = vadd.f32 %v201, %v178
  %v203 = vadd.f32 %v202, %v179
  %v204 = vadd.f32 %v203, %v180
  %v205 = vadd.f32 %v204, %v181
  %v206 = vadd.f32 %v205, %v182
  %v207 = vadd.f32 %v206, %v183
  %v208 = vadd.f32 %v207, %v184
  %v209 = vadd.f32 %v208, %v185
  %v210 = vadd.f32 %v209, %v186
  %v211 = vadd.f32 %v210, %v187
  %v212 = vrot.slane %v211, 4
  %v213 = vadd.f32 %v211, %v212
  %v214 = vrot.slane %v213, 2
  %v215 = vadd.f32 %v213, %v214
  %v216 = vrot.slane %v215, 1
  %v217 = vadd.f32 %v215, %v216
  %218 = vst [vmem:[%s4] sm:$0x1] %v217
  %v219 = vmul.f32 %v176, %v176
  %v220 = vmul.f32 %v177, %v177
  %v221 = vmul.f32 %v178, %v178
  %v222 = vmul.f32 %v179, %v179
  %v223 = vmul.f32 %v180, %v180
  %v224 = vmul.f32 %v181, %v181
  %v225 = vmul.f32 %v182, %v182
  %v226 = vmul.f32 %v183, %v183
  %v227 = vmul.f32 %v184, %v184
  %v228 = vmul.f32 %v185, %v185
  %v229 = vmul.f32 %v186, %v186
  %v230 = vmul.f32 %v187, %v187
  %v231 = vadd.f32 %v219, %v220
  %v232 = vadd.f32 %v231, %v221
  %v233 = vadd.f32 %v232, %v222
  %v234 = vadd.f32 %v233, %v223
  %v235 = vadd.f32 %v234, %v224
  %v236 = vadd.f32 %v235, %v225
  %v237 = vadd.f32 %v236, %v226
  %v238 = vadd.f32 %v237, %v227
  %v239 = vadd.f32 %v238, %v228
  %v240 = vadd.f32 %v239, %v229
  %v241 = vadd.f32 %v240, %v230
  %v242 = vrot.slane %v241, 4
  %v243 = vadd.f32 %v241, %v242
  %v244 = vrot.slane %v243, 2
  %v245 = vadd.f32 %v243, %v244
  %v246 = vrot.slane %v245, 1
  %v247 = vadd.f32 %v245, %v246
  %248 = vst [vmem:[%s4 + $0x1] sm:$0x1] %v247
  // Predicated region
  $region14: #{attention_forward.2} parent=0 // pred_check
    _
  $region15: #{attention_forward.2} parent=0 // pred_check_branch
    %250 = sbr.rel (0) target = $region17
  $region16: #{attention_forward.2} parent=0 // pred_region
    _
  $region17: #{attention_forward.2} parent=0 // pred_fallthru
    _
  // Predicated region
  $region18: #{attention_forward.2} parent=0 // pred_check
    _
  $region19: #{attention_forward.2} parent=0 // pred_check_branch
    %252 = sbr.rel (0) target = $region21
  $region20: #{attention_forward.2} parent=0 // pred_region
    _
  $region21: #{attention_forward.2} parent=0 // pred_fallthru
    _
  // Predicated region
  $region22: #{attention_forward.2} parent=0 // pred_check
    _
  $region23: #{attention_forward.2} parent=0 // pred_check_branch
    %254 = sbr.rel (0) target = $region25
  $region24: #{attention_forward.2} parent=0 // pred_region
    _
  $region25: #{attention_forward.2} parent=0 // pred_fallthru
    _
  // Predicated region
  $region26: #{attention_forward.2} parent=0 // pred_check
    _
  $region27: #{attention_forward.2} parent=0 // pred_check_branch
    %256 = sbr.rel (0) target = $region29
  $region28: #{attention_forward.2} parent=0 // pred_region
    _
  $region29: #{attention_forward.2} parent=0 // pred_fallthru
    _

// kernel: attention_forward.3
$region0: #{attention_forward.3}
  #allocation0 [shape = 'u32[]', space=smem, size = 0x4, offset = 0x4, fixed_abs, tag = 'smem constant byte address 0x4 - core index']
  #allocation1 [shape = 'u32[144,128]{1,0:T(1,128)}', space=vmem, size = 0x12000, scoped, tag = 'internal scratch']
  %s0 = inlined_call_operand.vmem [shape: f32[96,128], index: 0, kind: input, shape index: {}]
  %s1 = inlined_call_operand.vmem [shape: f32[2,128], index: 1, kind: input, shape index: {}]
  %s2 = inlined_call_operand.vmem [shape: f32[128,128], index: 2, kind: input, shape index: {}]
  %s3 = inlined_call_operand.vmem [shape: f32[1,128], index: 3, kind: input, shape index: {}]
  %s4 = inlined_call_operand.vmem [shape: f32[96,128], index: 4, kind: output, shape index: {}]
  %s5 = sld [smem:[#allocation0]]
  $region26: #{attention_forward.3} parent=0
    _
  %s7 = ssub.s32 1, %s5
  %s8 = scalar_select 0, %s7, %s5
  // Predicated region
  $region2: #{attention_forward.3} parent=0 // pred_check
    _
  $region3: #{attention_forward.3} parent=0 // pred_check_branch
    %10 = sbr.rel (0) target = $region5
  $region4: #{attention_forward.3} parent=0 // pred_region
    _
  $region5: #{attention_forward.3} parent=0 // pred_fallthru
    _
  // Predicated region
  $region6: #{attention_forward.3} parent=0 // pred_check
    _
  $region7: #{attention_forward.3} parent=0 // pred_check_branch
    %12 = sbr.rel (0) target = $region9
  $region8: #{attention_forward.3} parent=0 // pred_region
    _
  $region9: #{attention_forward.3} parent=0 // pred_fallthru
    _
  // Predicated region
  $region10: #{attention_forward.3} parent=0 // pred_check
    _
  $region11: #{attention_forward.3} parent=0 // pred_check_branch
    %14 = sbr.rel (0) target = $region13
  $region12: #{attention_forward.3} parent=0 // pred_region
    _
  $region13: #{attention_forward.3} parent=0 // pred_fallthru
    _
  // Predicated region
  $region14: #{attention_forward.3} parent=0 // pred_check
    _
  $region15: #{attention_forward.3} parent=0 // pred_check_branch
    %16 = sbr.rel (0) target = $region17
  $region16: #{attention_forward.3} parent=0 // pred_region
    _
  $region17: #{attention_forward.3} parent=0 // pred_fallthru
    _
  %v17 = vld [vmem:[%s0] sm:$0xff]
  %v18 = vld [vmem:[%s0 + $0x8] sm:$0xff]
  %v19 = vld [vmem:[%s0 + $0x10] sm:$0xff]
  %v20 = vld [vmem:[%s0 + $0x18] sm:$0xff]
  %v21 = vld [vmem:[%s0 + $0x20] sm:$0xff]
  %v22 = vld [vmem:[%s0 + $0x28] sm:$0xff]
  %v23 = vld [vmem:[%s0 + $0x30] sm:$0xff]
  %v24 = vld [vmem:[%s0 + $0x38] sm:$0xff]
  %v25 = vld [vmem:[%s0 + $0x40] sm:$0xff]
  %v26 = vld [vmem:[%s0 + $0x48] sm:$0xff]
  %v27 = vld [vmem:[%s0 + $0x50] sm:$0xff]
  %v28 = vld [vmem:[%s0 + $0x58] sm:$0xff]
  %v29 = vld [vmem:[%s1] sm:$0x1]
  %v30 = vlaneseq
  %v31 = vshrl.u32 %v30, 7
  %v32 = vsub.s32 0, %v31
  %v33 = vrot.slane %v29, %v32
  %v34 = vmul.f32 %v17, %v33
  %v35 = vmul.f32 %v18, %v33
  %v36 = vmul.f32 %v19, %v33
  %v37 = vmul.f32 %v20, %v33
  %v38 = vmul.f32 %v21, %v33
  %v39 = vmul.f32 %v22, %v33
  %v40 = vmul.f32 %v23, %v33
  %v41 = vmul.f32 %v24, %v33
  %v42 = vmul.f32 %v25, %v33
  %v43 = vmul.f32 %v26, %v33
  %v44 = vmul.f32 %v27, %v33
  %v45 = vmul.f32 %v28, %v33
  %v46 = vld [vmem:[%s1 + $0x1] sm:$0x1]
  %v47 = vlaneseq
  %v48 = vshrl.u32 %v47, 7
  %v49 = vsub.s32 0, %v48
  %v50 = vrot.slane %v46, %v49
  %v51 = vadd.f32 %v34, %v50
  %v52 = vadd.f32 %v35, %v50
  %v53 = vadd.f32 %v36, %v50
  %v54 = vadd.f32 %v37, %v50
  %v55 = vadd.f32 %v38, %v50
  %v56 = vadd.f32 %v39, %v50
  %v57 = vadd.f32 %v40, %v50
  %v58 = vadd.f32 %v41, %v50
  %v59 = vadd.f32 %v42, %v50
  %v60 = vadd.f32 %v43, %v50
  %v61 = vadd.f32 %v44, %v50
  %v62 = vadd.f32 %v45, %v50
  %v63 = vld [vmem:[%s2] sm:$0xff]
  %v64 = vld [vmem:[%s2 + $0x8] sm:$0xff]
  %v65 = vld [vmem:[%s2 + $0x10] sm:$0xff]
  %v66 = vld [vmem:[%s2 + $0x18] sm:$0xff]
  %v67 = vld [vmem:[%s2 + $0x20] sm:$0xff]
  %v68 = vld [vmem:[%s2 + $0x28] sm:$0xff]
  %v69 = vld [vmem:[%s2 + $0x30] sm:$0xff]
  %v70 = vld [vmem:[%s2 + $0x38] sm:$0xff]
  %v71 = vld [vmem:[%s2 + $0x40] sm:$0xff]
  %v72 = vld [vmem:[%s2 + $0x48] sm:$0xff]
  %v73 = vld [vmem:[%s2 + $0x50] sm:$0xff]
  %v74 = vld [vmem:[%s2 + $0x58] sm:$0xff]
  %v75 = vld [vmem:[%s2 + $0x60] sm:$0xff]
  %v76 = vld [vmem:[%s2 + $0x68] sm:$0xff]
  %v77 = vld [vmem:[%s2 + $0x70] sm:$0xff]
  %v78 = vld [vmem:[%s2 + $0x78] sm:$0xff]
  %v79 = vld [vmem:[%s3] sm:$0x1]
  %v81 = vlaneseq
  %v82 = vshrl.u32 %v81, 7
  %v83 = vsub.s32 0, %v82
  %v84 = vrot.slane %v79, %v83
  %86 = vmatprep.subr.mxu0 0.0
  %87 = vmatpush1.msra.mxu0 %v63
  %88 = vmatprep.subr.mxu0 0.0
  %89 = vmatpush1.msra.mxu0 %v64
  %90 = vmatprep.subr.mxu0 0.0
  %91 = vmatpush1.msra.mxu0 %v65
  %92 = vmatprep.subr.mxu0 0.0
  %93 = vmatpush1.msra.mxu0 %v66
  %94 = vmatprep.subr.mxu0 0.0
  %95 = vmatpush1.msra.mxu0 %v67
  %96 = vmatprep.subr.mxu0 0.0
  %97 = vmatpush1.msra.mxu0 %v68
  %98 = vmatprep.subr.mxu0 0.0
  %99 = vmatpush1.msra.mxu0 %v69
  %100 = vmatprep.subr.mxu0 0.0
  %101 = vmatpush1.msra.mxu0 %v70
  %102 = vmatprep.subr.mxu0 0.0
  %103 = vmatpush1.msra.mxu0 %v71
  %104 = vmatprep.subr.mxu0 0.0
  %105 = vmatpush1.msra.mxu0 %v72
  %106 = vmatprep.subr.mxu0 0.0
  %107 = vmatpush1.msra.mxu0 %v73
  %108 = vmatprep.subr.mxu0 0.0
  %109 = vmatpush1.msra.mxu0 %v74
  %110 = vmatprep.subr.mxu0 0.0
  %111 = vmatpush1.msra.mxu0 %v75
  %112 = vmatprep.subr.mxu0 0.0
  %113 = vmatpush1.msra.mxu0 %v76
  %114 = vmatprep.subr.mxu0 0.0
  %115 = vmatpush1.msra.mxu0 %v77
  %116 = vmatprep.subr.mxu0 0.0
  %117 = vmatpush1.msra.mxu0 %v78
  %118 = vmatprep.subr.mxu0 0.0
  %119 = vmatpush1.msra.mxu0 0.0
  %120 = vmatprep.subr.mxu0 0.0
  %121 = vmatpush1.msra.mxu0 0.0
  %122 = vmatprep.subr.mxu0 0.0
  %123 = vmatpush1.msra.mxu0 0.0
  %124 = vmatprep.subr.mxu0 0.0
  %125 = vmatpush1.msra.mxu0 0.0
  %126 = vmatprep.subr.mxu0 0.0
  %127 = vmatpush1.msra.mxu0 0.0
  %128 = vmatprep.subr.mxu0 0.0
  %129 = vmatpush1.msra.mxu0 0.0
  %130 = vmatprep.subr.mxu0 0.0
  %131 = vmatpush1.msra.mxu0 0.0
  %132 = vmatprep.subr.mxu0 0.0
  %133 = vmatpush1.msra.mxu0 0.0
  %134 = vmatprep.subr.mxu0 0.0
  %135 = vmatpush1.msra.mxu0 0.0
  %136 = vmatprep.subr.mxu0 0.0
  %137 = vmatpush1.msra.mxu0 0.0
  %138 = vmatprep.subr.mxu0 0.0
  %139 = vmatpush1.msra.mxu0 0.0
  %140 = vmatprep.subr.mxu0 0.0
  %141 = vmatpush1.msra.mxu0 0.0
  %142 = vmatprep.subr.mxu0 0.0
  %143 = vmatpush1.msra.mxu0 0.0
  %144 = vmatprep.subr.mxu0 0.0
  %145 = vmatpush1.msra.mxu0 0.0
  %146 = vmatprep.subr.mxu0 0.0
  %147 = vmatpush1.msra.mxu0 0.0
  %148 = vmatprep.subr.mxu0 0.0
  %149 = vmatpush1.msra.mxu0 0.0
  %150 = vmatprep.mubr.f32.mxu0 0.0
  %151 = vmatmul.mubr.f32.gmra.mrb[0].mxu0 %v51
  %v152 = vpop.f32.mrb[0].mxu0
  %v153 = vadd.f32 %v84, %v152
  %v154 = vpop.f32.mrb[0].mxu0
  %155 = vmatprep.mubr.f32.mxu0 0.0
  %156 = vmatmul.mubr.f32.gmra.mrb[0].mxu0 %v52
  %v157 = vpop.f32.mrb[0].mxu0
  %v158 = vadd.f32 %v84, %v157
  %v159 = vpop.f32.mrb[0].mxu0
  %160 = vmatprep.mubr.f32.mxu0 0.0
  %161 = vmatmul.mubr.f32.gmra.mrb[0].mxu0 %v53
  %v162 = vpop.f32.mrb[0].mxu0
  %v163 = vadd.f32 %v84, %v162
  %v164 = vpop.f32.mrb[0].mxu0
  %165 = vmatprep.mubr.f32.mxu0 0.0
  %166 = vmatmul.mubr.f32.gmra.mrb[0].mxu0 %v54
  %v167 = vpop.f32.mrb[0].mxu0
  %v168 = vadd.f32 %v84, %v167
  %v169 = vpop.f32.mrb[0].mxu0
  %170 = vmatprep.mubr.f32.mxu0 0.0
  %171 = vmatmul.mubr.f32.gmra.mrb[0].mxu0 %v55
  %v172 = vpop.f32.mrb[0].mxu0
  %v173 = vadd.f32 %v84, %v172
  %v174 = vpop.f32.mrb[0].mxu0
  %175 = vmatprep.mubr.f32.mxu0 0.0
  %176 = vmatmul.mubr.f32.gmra.mrb[0].mxu0 %v56
  %v177 = vpop.f32.mrb[0].mxu0
  %v178 = vadd.f32 %v84, %v177
  %v179 = vpop.f32.mrb[0].mxu0
  %180 = vmatprep.mubr.f32.mxu0 0.0
  %181 = vmatmul.mubr.f32.gmra.mrb[0].mxu0 %v57
  %v182 = vpop.f32.mrb[0].mxu0
  %v183 = vadd.f32 %v84, %v182
  %v184 = vpop.f32.mrb[0].mxu0
  %185 = vmatprep.mubr.f32.mxu0 0.0
  %186 = vmatmul.mubr.f32.gmra.mrb[0].mxu0 %v58
  %v187 = vpop.f32.mrb[0].mxu0
  %v188 = vadd.f32 %v84, %v187
  %v189 = vpop.f32.mrb[0].mxu0
  %190 = vmatprep.mubr.f32.mxu0 0.0
  %191 = vmatmul.mubr.f32.gmra.mrb[0].mxu0 %v59
  %v192 = vpop.f32.mrb[0].mxu0
  %v193 = vadd.f32 %v84, %v192
  %v194 = vpop.f32.mrb[0].mxu0
  %195 = vmatprep.mubr.f32.mxu0 0.0
  %196 = vmatmul.mubr.f32.gmra.mrb[0].mxu0 %v60
  %v197 = vpop.f32.mrb[0].mxu0
  %v198 = vadd.f32 %v84, %v197
  %v199 = vpop.f32.mrb[0].mxu0
  %200 = vmatprep.mubr.f32.mxu0 0.0
  %201 = vmatmul.mubr.f32.gmra.mrb[0].mxu0 %v61
  %v202 = vpop.f32.mrb[0].mxu0
  %v203 = vadd.f32 %v84, %v202
  %v204 = vpop.f32.mrb[0].mxu0
  %205 = vmatprep.mubr.f32.mxu0 0.0
  %206 = vmatmul.mubr.f32.gmra.mrb[0].mxu0 %v62
  %v207 = vpop.f32.mrb[0].mxu0
  %v208 = vadd.f32 %v84, %v207
  %v209 = vpop.f32.mrb[0].mxu0
  %210 = vdwg.mxu0
  %211 = vst [vmem:[%s4] sm:$0xff] %v153
  %212 = vst [vmem:[%s4 + $0x8] sm:$0xff] %v158
  %213 = vst [vmem:[%s4 + $0x10] sm:$0xff] %v163
  %214 = vst [vmem:[%s4 + $0x18] sm:$0xff] %v168
  %215 = vst [vmem:[%s4 + $0x20] sm:$0xff] %v173
  %216 = vst [vmem:[%s4 + $0x28] sm:$0xff] %v178
  %217 = vst [vmem:[%s4 + $0x30] sm:$0xff] %v183
  %218 = vst [vmem:[%s4 + $0x38] sm:$0xff] %v188
  %219 = vst [vmem:[%s4 + $0x40] sm:$0xff] %v193
  %220 = vst [vmem:[%s4 + $0x48] sm:$0xff] %v198
  %221 = vst [vmem:[%s4 + $0x50] sm:$0xff] %v203
  %222 = vst [vmem:[%s4 + $0x58] sm:$0xff] %v208
  // Predicated region
  $region18: #{attention_forward.3} parent=0 // pred_check
    _
  $region19: #{attention_forward.3} parent=0 // pred_check_branch
    %224 = sbr.rel (0) target = $region21
  $region20: #{attention_forward.3} parent=0 // pred_region
    _
  $region21: #{attention_forward.3} parent=0 // pred_fallthru
    _
  // Predicated region
  $region22: #{attention_forward.3} parent=0 // pred_check
    _
  $region23: #{attention_forward.3} parent=0 // pred_check_branch
    %226 = sbr.rel (0) target = $region25
  $region24: #{attention_forward.3} parent=0 // pred_region
    _
  $region25: #{attention_forward.3} parent=0 // pred_fallthru
    _

</llo_original>
